<compile_context>
chip_gen: v7x
topology: tpu7x:2x2x1
jax: 0.10.0
libtpu: 0.0.40
codegen_flags: <defaults>
</compile_context>

<pallas_src>
import functools
import math

import jax
import jax.numpy as jnp
from jax.experimental import pallas as pl
from jax.experimental.pallas import tpu as pltpu


def _round_up(x, m):
    return ((x + m - 1) // m) * m


def time_embedding_kernel(t_ref, wt_ref, bt_ref, wp_ref, bp_ref, out_ref, *, dim, r):
    t = t_ref[...]                       # (TILE_M, r)
    if r == 1:
        t_exp = t                        # (TILE_M, 1) broadcasts against (1, dim)
    else:
        # Lane-dense expansion: column j of t fills lanes [j*dim, (j+1)*dim).
        t_exp = jnp.concatenate(
            [jnp.broadcast_to(t[:, j:j + 1], (t.shape[0], dim)) for j in range(r)],
            axis=1,
        )                                # (TILE_M, r*dim)

    wt = wt_ref[...]                     # (1, r*dim)
    bt = bt_ref[...]
    wp = wp_ref[...]
    bp = bp_ref[...]

    trend = jnp.maximum(t_exp * wt + bt, 0.0)   # relu(linear_trend(t))   (VPU)
    period = jnp.sin(t_exp * wp + bp)           # sin(linear_period(t))   (VPU poly)
    out_ref[...] = trend + period


def time_embedding(t, w_trend, b_trend, w_period, b_period, *, tile_rows=512):
    """t: (..., 1) float; weights: (dim, 1); biases: (dim,). Returns (..., dim) f32."""
    dim = int(w_trend.shape[0])
    lead_shape = t.shape[:-1]
    n = math.prod(lead_shape)

    # Lane-packing factor: pack r consecutive time steps per 128-lane row.
    if dim < 128 and 128 % dim == 0:
        r = 128 // dim
    else:
        r = 1
    width = r * dim

    n_rows = -(-n // r)                                  # packed rows needed
    tile_m = min(tile_rows, _round_up(max(n_rows, 1), 8))
    n_rows_pad = _round_up(max(n_rows, 1), tile_m)
    n_pad = n_rows_pad * r

    # Pack t: (n,) -> pad with zeros -> (n_rows_pad, r).  Row-major layout is
    # identical to the flat order, so this and the output unpack are free.
    t_flat = t.reshape(n).astype(jnp.float32)
    t_flat = jnp.pad(t_flat, (0, n_pad - n))
    t_packed = t_flat.reshape(n_rows_pad, r)

    def prep(w, b):
        wv = w.reshape(1, dim).astype(jnp.float32)
        bv = b.reshape(1, dim).astype(jnp.float32)
        if r > 1:
            wv = jnp.tile(wv, (1, r))                    # (1, 128)
            bv = jnp.tile(bv, (1, r))
        return wv, bv

    wt, bt = prep(w_trend, b_trend)
    wp, bp = prep(w_period, b_period)

    grid = (n_rows_pad // tile_m,)
    kernel = functools.partial(time_embedding_kernel, dim=dim, r=r)

    out_packed = pl.pallas_call(
        kernel,
        out_shape=jax.ShapeDtypeStruct((n_rows_pad, width), jnp.float32),
        grid=grid,
        in_specs=[
            pl.BlockSpec((tile_m, r), lambda i: (i, 0)),       # packed time values
            pl.BlockSpec((1, width), lambda i: (0, 0)),        # w_trend  (tiled)
            pl.BlockSpec((1, width), lambda i: (0, 0)),        # b_trend  (tiled)
            pl.BlockSpec((1, width), lambda i: (0, 0)),        # w_period (tiled)
            pl.BlockSpec((1, width), lambda i: (0, 0)),        # b_period (tiled)
        ],
        out_specs=pl.BlockSpec((tile_m, width), lambda i: (i, 0)),
        compiler_params=pltpu.CompilerParams(
            dimension_semantics=("parallel",),                 # megacore split on v7x
        ),
        cost_estimate=pl.CostEstimate(
            flops=6 * n_pad * dim,
            transcendentals=n_pad * dim,
            bytes_accessed=4 * (n_pad * dim + n_pad + 4 * width),
        ),
    )(t_packed, wt, bt, wp, bp)

    # (n_rows_pad, r*dim) is row-major identical to (n_pad, dim); drop padding.
    out = out_packed.reshape(n_pad, dim)[:n]
    return out.reshape(*lead_shape, dim)


def time_embedding_ref(t, w_trend, b_trend, w_period, b_period):
    trend = jax.nn.relu(t @ w_trend.T + b_trend)
    period = jnp.sin(t @ w_period.T + b_period)
    return trend + period


if __name__ == "__main__":
    key = jax.random.PRNGKey(0)
    k_t, k_wt, k_bt, k_wp, k_bp = jax.random.split(key, 5)

    batch, seq, dim = 2, 8, 32

    # Input: time values, shape (batch, seq, 1)  (last dim = Linear in_features = 1)
    t = jax.random.normal(k_t, (batch, seq, 1), dtype=jnp.float32)

    # Deterministic parameter init (PyTorch Linear(1, dim) shapes: W (dim, 1), b (dim,))
    bound = 1.0  # PyTorch init bound = 1/sqrt(in_features) = 1
    w_trend = jax.random.uniform(k_wt, (dim, 1), jnp.float32, -bound, bound)
    b_trend = jax.random.uniform(k_bt, (dim,), jnp.float32, -bound, bound)
    w_period = jax.random.uniform(k_wp, (dim, 1), jnp.float32, -bound, bound)
    b_period = jax.random.uniform(k_bp, (dim,), jnp.float32, -bound, bound)

    out = time_embedding(t, w_trend, b_trend, w_period, b_period)
    out = jax.block_until_ready(out)

    ref = time_embedding_ref(t, w_trend, b_trend, w_period, b_period)
    assert out.shape == (batch, seq, dim), out.shape
    assert jnp.allclose(out, ref, atol=1e-5, rtol=1e-5), "mismatch vs reference"

    print("KERNEL_OK")
</pallas_src>

<mosaic_0001>
module attributes {stable_mosaic.version = 11 : i64} {
  func.func @time_embedding_kernel(%arg0: i32, %arg1: memref<8x4xf32, #tpu.memory_space<vmem>>, %arg2: memref<1x128xf32, #tpu.memory_space<vmem>>, %arg3: memref<1x128xf32, #tpu.memory_space<vmem>>, %arg4: memref<1x128xf32, #tpu.memory_space<vmem>>, %arg5: memref<1x128xf32, #tpu.memory_space<vmem>>, %arg6: memref<8x128xf32, #tpu.memory_space<vmem>>) attributes {dimension_semantics = [#tpu.dimension_semantics<parallel>], iteration_bounds = array<i64: 1>, scalar_prefetch = 0 : i64, scratch_operands = 0 : i64, tpu.core_type = #tpu.core_type<tc>, window_params = [{transform_indices = @transform_0, window_bounds = array<i64: 8, 4>}, {pipeline_mode = #tpu.pipeline_mode<synchronous>, transform_indices = @transform_1, window_bounds = array<i64: 1, 128>}, {pipeline_mode = #tpu.pipeline_mode<synchronous>, transform_indices = @transform_2, window_bounds = array<i64: 1, 128>}, {pipeline_mode = #tpu.pipeline_mode<synchronous>, transform_indices = @transform_3, window_bounds = array<i64: 1, 128>}, {pipeline_mode = #tpu.pipeline_mode<synchronous>, transform_indices = @transform_4, window_bounds = array<i64: 1, 128>}, {transform_indices = @transform_5, window_bounds = array<i64: 8, 128>}]} {
    %c0 = arith.constant 0 : index
    %c0_0 = arith.constant 0 : index
    %0 = vector.load %arg1[%c0, %c0_0] : memref<8x4xf32, #tpu.memory_space<vmem>>, vector<8x4xf32>
    %1 = vector.extract_strided_slice %0 {offsets = [0, 0], sizes = [8, 1], strides = [1, 1]} : vector<8x4xf32> to vector<8x1xf32>
    %2 = vector.shape_cast %1 : vector<8x1xf32> to vector<8x1xf32>
    %3 = vector.broadcast %2 : vector<8x1xf32> to vector<8x32xf32>
    %4 = vector.extract_strided_slice %0 {offsets = [0, 1], sizes = [8, 1], strides = [1, 1]} : vector<8x4xf32> to vector<8x1xf32>
    %5 = vector.shape_cast %4 : vector<8x1xf32> to vector<8x1xf32>
    %6 = vector.broadcast %5 : vector<8x1xf32> to vector<8x32xf32>
    %7 = vector.extract_strided_slice %0 {offsets = [0, 2], sizes = [8, 1], strides = [1, 1]} : vector<8x4xf32> to vector<8x1xf32>
    %8 = vector.shape_cast %7 : vector<8x1xf32> to vector<8x1xf32>
    %9 = vector.broadcast %8 : vector<8x1xf32> to vector<8x32xf32>
    %10 = vector.extract_strided_slice %0 {offsets = [0, 3], sizes = [8, 1], strides = [1, 1]} : vector<8x4xf32> to vector<8x1xf32>
    %11 = vector.shape_cast %10 : vector<8x1xf32> to vector<8x1xf32>
    %12 = vector.broadcast %11 : vector<8x1xf32> to vector<8x32xf32>
    %13 = tpu.concatenate %3, %6, %9, %12 in 1 : vector<8x32xf32>, vector<8x32xf32>, vector<8x32xf32>, vector<8x32xf32> -> vector<8x128xf32>
    %c0_1 = arith.constant 0 : index
    %c0_2 = arith.constant 0 : index
    %14 = vector.load %arg2[%c0_1, %c0_2] : memref<1x128xf32, #tpu.memory_space<vmem>>, vector<1x128xf32>
    %c0_3 = arith.constant 0 : index
    %c0_4 = arith.constant 0 : index
    %15 = vector.load %arg3[%c0_3, %c0_4] : memref<1x128xf32, #tpu.memory_space<vmem>>, vector<1x128xf32>
    %c0_5 = arith.constant 0 : index
    %c0_6 = arith.constant 0 : index
    %16 = vector.load %arg4[%c0_5, %c0_6] : memref<1x128xf32, #tpu.memory_space<vmem>>, vector<1x128xf32>
    %c0_7 = arith.constant 0 : index
    %c0_8 = arith.constant 0 : index
    %17 = vector.load %arg5[%c0_7, %c0_8] : memref<1x128xf32, #tpu.memory_space<vmem>>, vector<1x128xf32>
    %18 = vector.broadcast %14 : vector<1x128xf32> to vector<8x128xf32>
    %19 = arith.mulf %13, %18 : vector<8x128xf32>
    %20 = vector.broadcast %15 : vector<1x128xf32> to vector<8x128xf32>
    %21 = arith.addf %19, %20 : vector<8x128xf32>
    %cst = arith.constant 0.000000e+00 : f32
    %22 = vector.broadcast %cst : f32 to vector<8x128xf32>
    %23 = arith.maximumf %21, %22 : vector<8x128xf32>
    %24 = vector.broadcast %16 : vector<1x128xf32> to vector<8x128xf32>
    %25 = arith.mulf %13, %24 : vector<8x128xf32>
    %26 = vector.broadcast %17 : vector<1x128xf32> to vector<8x128xf32>
    %27 = arith.addf %25, %26 : vector<8x128xf32>
    %28 = math.sin %27 : vector<8x128xf32>
    %29 = arith.addf %23, %28 : vector<8x128xf32>
    %c0_9 = arith.constant 0 : index
    %c0_10 = arith.constant 0 : index
    %30 = vector.load %arg6[%c0_9, %c0_10] : memref<8x128xf32, #tpu.memory_space<vmem>>, vector<8x128xf32>
    tpu.vector_store %arg6[%c0_9, %c0_10], %29 {strides = array<i32>} : memref<8x128xf32, #tpu.memory_space<vmem>>, vector<8x128xf32>,
    return
  }
  func.func @transform_0(%arg0: i32) -> (i32, i32) {
    %c0_i32 = arith.constant 0 : i32
    %c0_i32_0 = arith.constant 0 : i32
    return %arg0, %c0_i32 : i32, i32
  }
  func.func @transform_1(%arg0: i32) -> (i32, i32) {
    %c0_i32 = arith.constant 0 : i32
    %c0_i32_0 = arith.constant 0 : i32
    %c0_i32_1 = arith.constant 0 : i32
    return %c0_i32, %c0_i32_0 : i32, i32
  }
  func.func @transform_2(%arg0: i32) -> (i32, i32) {
    %c0_i32 = arith.constant 0 : i32
    %c0_i32_0 = arith.constant 0 : i32
    %c0_i32_1 = arith.constant 0 : i32
    return %c0_i32, %c0_i32_0 : i32, i32
  }
  func.func @transform_3(%arg0: i32) -> (i32, i32) {
    %c0_i32 = arith.constant 0 : i32
    %c0_i32_0 = arith.constant 0 : i32
    %c0_i32_1 = arith.constant 0 : i32
    return %c0_i32, %c0_i32_0 : i32, i32
  }
  func.func @transform_4(%arg0: i32) -> (i32, i32) {
    %c0_i32 = arith.constant 0 : i32
    %c0_i32_0 = arith.constant 0 : i32
    %c0_i32_1 = arith.constant 0 : i32
    return %c0_i32, %c0_i32_0 : i32, i32
  }
  func.func @transform_5(%arg0: i32) -> (i32, i32) {
    %c0_i32 = arith.constant 0 : i32
    %c0_i32_0 = arith.constant 0 : i32
    return %arg0, %c0_i32 : i32, i32
  }
}

</mosaic_0001>

<llo_original>
// kernel: tpu_custom_call.1
$region0: #{tpu_custom_call.1}
  #allocation0 [shape = 'u32[]', space=smem, size = 0x4, offset = 0x4, fixed_abs, tag = 'smem constant byte address 0x4 - core index']
  #allocation1 [shape = 'u32[144,128]{1,0:T(1,128)}', space=vmem, size = 0x12000, scoped, tag = 'internal scratch']
  %s0 = inlined_call_operand.vmem [shape: f32[8,4], index: 0, kind: input, shape index: {}]
  %s1 = inlined_call_operand.vmem [shape: f32[1,128], index: 1, kind: input, shape index: {}]
  %s2 = inlined_call_operand.vmem [shape: f32[1,128], index: 2, kind: input, shape index: {}]
  %s3 = inlined_call_operand.vmem [shape: f32[1,128], index: 3, kind: input, shape index: {}]
  %s4 = inlined_call_operand.vmem [shape: f32[1,128], index: 4, kind: input, shape index: {}]
  %s5 = inlined_call_operand.hbm [shape: f32[8,128], index: 5, kind: output, shape index: {}]
  %s6 = sld [smem:[#allocation0]]
  $region30: #{tpu_custom_call.1} parent=0
    _
  %s8 = ssub.s32 1, %s6
  %s9 = scalar_select 0, %s8, %s6
  $region1: #{tpu_custom_call.1} parent=0
    #allocation2 [shape = 'u8[4096]{0}', space=vmem, size = 0x1000, scoped, tag = 'output window, operand 0, single buffered']
    #allocation3 [shape = 's32[1]{0}', space=sflag, size = 0x4, scoped, tag = 'scoped memory for tpu_custom_call.1']
    %10 = vsyncpa [#allocation3], 0
    // Predicated region
    $region2: #{tpu_custom_call.1} parent=1 // pred_check
      _
    $region3: #{tpu_custom_call.1} parent=1 // pred_check_branch
      %12 = sbr.rel (0) target = $region5
    $region4: #{tpu_custom_call.1} parent=1 // pred_region
      _
    $region5: #{tpu_custom_call.1} parent=1 // pred_fallthru
      _
    // Predicated region
    $region6: #{tpu_custom_call.1} parent=1 // pred_check
      _
    $region7: #{tpu_custom_call.1} parent=1 // pred_check_branch
      %14 = sbr.rel (0) target = $region9
    $region8: #{tpu_custom_call.1} parent=1 // pred_region
      _
    $region9: #{tpu_custom_call.1} parent=1 // pred_fallthru
      _
    // Predicated region
    $region10: #{tpu_custom_call.1} parent=1 // pred_check
      _
    $region11: #{tpu_custom_call.1} parent=1 // pred_check_branch
      %16 = sbr.rel (0) target = $region13
    $region12: #{tpu_custom_call.1} parent=1 // pred_region
      _
    $region13: #{tpu_custom_call.1} parent=1 // pred_fallthru
      _
    // Predicated region
    $region14: #{tpu_custom_call.1} parent=1 // pred_check
      _
    $region15: #{tpu_custom_call.1} parent=1 // pred_check_branch
      %18 = sbr.rel (0) target = $region17
    $region16: #{tpu_custom_call.1} parent=1 // pred_region
      _
    $region17: #{tpu_custom_call.1} parent=1 // pred_fallthru
      _
    // Predicated region
    $region18: #{tpu_custom_call.1} parent=1 // pred_check
      _
    $region19: #{tpu_custom_call.1} parent=1 // pred_check_branch
      %20 = sbr.rel (0) target = $region21
    $region20: #{tpu_custom_call.1} parent=1 // pred_region
      _
    $region21: #{tpu_custom_call.1} parent=1 // pred_fallthru
      _
    %v21 = vld [vmem:[%s0] sm:$0xff]
    %23 = vset.pattern.permute.xlu0 0
    %24 = vperm.xlu0 %23, %v21
    %v25 = vpop.permute.xlu0 %24
    %27 = vset.pattern.permute.xlu0 1
    %28 = vperm.xlu0 %27, %v21
    %v29 = vpop.permute.xlu0 %28
    %31 = vset.pattern.permute.xlu0 2
    %32 = vperm.xlu0 %31, %v21
    %v33 = vpop.permute.xlu0 %32
    %35 = vset.pattern.permute.xlu0 3
    %36 = vperm.xlu0 %35, %v21
    %v37 = vpop.permute.xlu0 %36
    %vm39 = vcmask 261120
    %v40 = vsel %vm39, %v25, %v29
    %vm41 = vcmask 523264
    %v42 = vsel %vm41, %v40, %v33
    %vm43 = vcmask 785408
    %v44 = vsel %vm43, %v42, %v37
    %v45 = vld [vmem:[%s1] sm:$0x1]
    %v46 = vld [vmem:[%s2] sm:$0x1]
    %v47 = vld [vmem:[%s3] sm:$0x1]
    %v48 = vld [vmem:[%s4] sm:$0x1]
    %v50 = vlaneseq
    %v51 = vshrl.u32 %v50, 7
    %v52 = vsub.s32 0, %v51
    %v53 = vrot.slane %v45, %v52
    %v55 = vmul.f32 %v44, %v53
    %v57 = vlaneseq
    %v58 = vshrl.u32 %v57, 7
    %v59 = vsub.s32 0, %v58
    %v60 = vrot.slane %v46, %v59
    %v62 = vadd.f32 %v55, %v60
    %v63 = vmax.f32 %v62, 0.0
    %v65 = vlaneseq
    %v66 = vshrl.u32 %v65, 7
    %v67 = vsub.s32 0, %v66
    %v68 = vrot.slane %v47, %v67
    %v70 = vmul.f32 %v44, %v68
    %v72 = vlaneseq
    %v73 = vshrl.u32 %v72, 7
    %v74 = vsub.s32 0, %v73
    %v75 = vrot.slane %v48, %v74
    %v77 = vadd.f32 %v70, %v75
    %v78 = vand.u32 2147483647, %v77
    %vm79 = vcmp.le.f32.partialorder %v78, 0.7853982
    %vm80 = vcmp.lt.s32.totalorder %v77, 0
    %v81 = vand.u32 %v77, 2139095040
    %v82 = vshrl.u32 %v81, 23
    %v83 = vsub.s32 %v82, 127
    %v84 = vand.u32 2147483647, %v77
    %v85 = vand.u32 %v84, 8388607
    %v86 = vor.u32 %v85, 8388608
    %v87 = vsub.s32 0, %v86
    %v88 = vadd.s32 %v83, 1
    %vm89 = vcmp.gt.s32.totalorder %v88, 0
    %v90 = vsel %vm89, %v88, 0
    %v91 = vshrl.u32 %v90, 5
    %v92 = vand.u32 %v90, 31
    %v93 = vsub.s32 32, %v92
    %v94 = vshrl.u32 683565275, %v93
    %v95 = vshll.u32 683565275, %v92
    %v96 = vshrl.u32 2475754826, %v93
    %v97 = vor.u32 %v95, %v96
    %v98 = vshll.u32 2475754826, %v92
    %v99 = vshrl.u32 2131351028, %v93
    %v100 = vor.u32 %v98, %v99
    %v101 = vshll.u32 2131351028, %v92
    %v102 = vshrl.u32 2102212464, %v93
    %v103 = vor.u32 %v101, %v102
    %v104 = vshll.u32 2102212464, %v92
    %v105 = vshrl.u32 920167782, %v93
    %v106 = vor.u32 %v104, %v105
    %v107 = vshll.u32 920167782, %v92
    %v108 = vshrl.u32 1326507024, %v93
    %v109 = vor.u32 %v107, %v108
    %vm110 = vcmp.lt.s32.totalorder %v91, 1
    %vm111 = vcmp.lt.s32.totalorder %v91, 2
    %vm112 = vcmp.lt.s32.totalorder %v91, 3
    %vm113 = vcmp.lt.s32.totalorder %v91, 4
    %v114 = vsel %vm110, %v94, %v97
    %v115 = vsel %vm113, %v103, 2102212464
    %v116 = vsel %vm112, %v100, %v115
    %v117 = vsel %vm111, %v114, %v116
    %v118 = vsel %vm110, %v97, %v100
    %v119 = vsel %vm113, %v106, 920167782
    %v120 = vsel %vm112, %v103, %v119
    %v121 = vsel %vm111, %v118, %v120
    %v122 = vsel %vm110, %v100, %v103
    %v123 = vsel %vm113, %v109, 1326507024
    %v124 = vsel %vm112, %v106, %v123
    %v125 = vsel %vm111, %v122, %v124
    %v126 = vshll.u32 %v86, 8
    %v127 = vmul.u32.u64.compose %v126, %v125
    %v128 = vextract.low.u32 %v127
    %v129 = vextract.high.u32 %v127
    %v130 = vmul.u32.u64.compose %v126, %v121
    %v131 = vextract.low.u32 %v130
    %v132 = vextract.high.u32 %v130
    %v133 = vmul.u32 %v126, %v117
    %v134 = vadd.s32 %v129, %v131
    %vm135 = vc.u32 %v129, %v131
    %v136 = vadd.s32 %v132, 1
    %v137 = vsel %vm135, %v136, %v132
    %v138 = vadd.s32 %v133, %v137
    %v139 = vadd.s32 %v138, 536870912
    %v140 = vshrl.u32 %v139, 30
    %v141 = vshll.u32 %v140, 30
    %v142 = vsub.s32 %v138, %v141
    %vm143 = vcmp.lt.s32.totalorder %v142, 0
    %v144 = vsub.s32 0, %v142
    %v145 = vsel %vm143, %v144, %v142
    %v146 = vclz %v145
    %v147 = vsub.s32 %v146, 2
    %vm148 = vcmp.gt.s32.totalorder 0, %v147
    %v149 = vsel %vm148, 0, %v147
    %v150 = vsub.s32 32, %v149
    %v151 = vshll.u32 %v142, %v149
    %v152 = vshrl.u32 %v134, %v150
    %v153 = vor.u32 %v151, %v152
    %v154 = vsub.s32 4294967266, %v149
    %v155 = vadd.s32 %v154, 127
    %v156 = vshll.u32 %v155, 23
    %v157 = vor.u32 4788187, %v156
    %v158 = vand.u32 2147483647, %v157
    %v160 = vcvt.s32.f32 %v153
    %v161 = vmul.f32 %v160, %v158
    %v162 = vxor.u32 %v161, 2147483648
    %v163 = vsel %vm80, %v162, %v161
    %v164 = vsub.s32 4, %v140
    %v165 = vsel %vm80, %v164, %v140
    %v166 = vsel %vm79, %v77, %v163
    %v167 = vsel %vm79, 0, %v165
    %v168 = vcosq.f32.pop %v166
    %v169 = vsinq.f32.pop %v166
    %vm170 = vweird.f32 %v77
    %v171 = vadd.s32 %v167, 3
    %v172 = vand.u32 %v171, 3
    %vm173 = vcmp.lt.s32.totalorder %v172, 2
    %vm174 = vcmp.eq.s32.totalorder %v172, 0
    %v175 = vxor.u32 %v169, 2147483648
    %v176 = vsel %vm174, %v168, %v175
    %vm177 = vcmp.eq.s32.totalorder %v172, 2
    %v178 = vxor.u32 %v168, 2147483648
    %v179 = vsel %vm177, %v178, %v169
    %v180 = vsel %vm173, %v176, %v179
    %v181 = vsel %vm170, nan, %v180
    %v182 = vadd.f32 %v63, %v181
    %183 = vst [vmem:[#allocation2] sm:$0xff] %v182
    // Predicated region
    $region22: #{tpu_custom_call.1} parent=1 // pred_check
      _
    $region23: #{tpu_custom_call.1} parent=1 // pred_check_branch
      %185 = sbr.rel (0) target = $region25
    $region24: #{tpu_custom_call.1} parent=1 // pred_region
      %s187 = ssub.s32 128, 128
      %188 = vsyncadd [#allocation3], %s187
      %s190 = sshll.u32 [#allocation2], 4
      %s191 = int_to_ptr.vmem [resolvable:$true] %s190
      %193 = dma.vmem_to_hbm [thread:$0]  %s191, 128, %s5, [#allocation3]
    $region25: #{tpu_custom_call.1} parent=1 // pred_fallthru
      _
    // Predicated region
    $region26: #{tpu_custom_call.1} parent=1 // pred_check
      _
    $region27: #{tpu_custom_call.1} parent=1 // pred_check_branch
      %195 = sbr.rel (0) target = $region29
    $region28: #{tpu_custom_call.1} parent=1 // pred_region
      %196 = dma.done [#allocation3], 128
    $region29: #{tpu_custom_call.1} parent=1 // pred_fallthru
      _
    %197 = vsyncpa [#allocation3], 1

</llo_original>
